<compile_context>
chip_gen: v7x
topology: tpu7x:2x2x1
jax: 0.10.0
libtpu: 0.0.40
codegen_flags: <defaults>
</compile_context>

<pallas_src>
import jax
import jax.numpy as jnp
from jax.experimental import pallas as pl
from jax.experimental.pallas import tpu as pltpu


_LANES = 1024     # lane-dense last dim: large multiple of 128 -> unmasked vst
_TM_MAX = 256     # 256 x 1024 f32 = 1 MiB per block; multiple of 8/16/32 sublane packing


def _sine_kernel(params_ref, x_ref, o_ref):
    # params_ref lives in SMEM: [w0, b0] as f32 scalars (scalar loads, free slot).
    w0 = params_ref[0]
    b0 = params_ref[1]
    x = x_ref[...].astype(jnp.float32)      # f32 math (v5e has no bf16 VPU/EUP anyway)
    o_ref[...] = jnp.sin(w0 * x + b0).astype(o_ref.dtype)


def _round_up(n: int, m: int) -> int:
    return ((n + m - 1) // m) * m


def sine_pallas(x: jax.Array, w0: float = 1.0, b0: float = 0.0) -> jax.Array:
    orig_shape = x.shape
    dtype = x.dtype
    total = int(x.size)

    # Packed sublane count for this dtype: 8 (f32), 16 (bf16/f16), 32 (int8/fp8).
    itemsize = jnp.dtype(dtype).itemsize
    sub = max(8, 32 // itemsize)

    # Choose the row-tile: for small inputs shrink it (keeping sublane alignment) so
    # we don't pad a tiny tensor out to a full 1 MiB block; for large inputs use the
    # full 256-row tile and pad rows up to a multiple of it.
    rows_needed = pl.cdiv(total, _LANES)
    if rows_needed <= _TM_MAX:
        tm = _round_up(max(rows_needed, 1), sub)
    else:
        tm = _TM_MAX
    rows = _round_up(rows_needed, tm)
    padded_total = rows * _LANES

    # Flatten + pad to a lane-dense 2-D slab [rows, 1024].
    xf = x.reshape(-1)
    if padded_total != total:
        xf = jnp.pad(xf, (0, padded_total - total))
    x2 = xf.reshape(rows, _LANES)

    # Runtime scalars in SMEM (no recompile when w0/b0 change).
    params = jnp.array([w0, b0], dtype=jnp.float32)

    grid = (rows // tm,)

    out2 = pl.pallas_call(
        _sine_kernel,
        out_shape=jax.ShapeDtypeStruct((rows, _LANES), dtype),
        grid_spec=pltpu.PrefetchScalarGridSpec(
            num_scalar_prefetch=0,
            grid=grid,
            in_specs=[
                pl.BlockSpec(memory_space=pltpu.MemorySpace.SMEM),   # [w0, b0]
                pl.BlockSpec((tm, _LANES), lambda i: (i, 0)),        # input tile
            ],
            out_specs=pl.BlockSpec((tm, _LANES), lambda i: (i, 0)),
        ),
        compiler_params=pltpu.CompilerParams(
            # Single independent axis -> shards across both TensorCores on v7x.
            dimension_semantics=("parallel",),
        ),
    )(params, x2)

    out = out2.reshape(-1)
    if padded_total != total:
        out = out[:total]
    return out.reshape(orig_shape)


if __name__ == "__main__":
    key = jax.random.PRNGKey(0)
    # NCHW, 4-D as required by the PyTorch module's transpose(0, 3)
    x = jax.random.normal(key, (2, 4, 16, 16), dtype=jnp.float32)

    w0, b0 = 30.0, 0.5  # Sine module parameters (deterministic, set in-script)

    out = sine_pallas(x, w0=w0, b0=b0)
    out = jax.block_until_ready(out)

    # Reference check against plain JAX
    ref = jnp.sin(w0 * x + b0)
    assert out.shape == x.shape and out.dtype == x.dtype
    assert jnp.allclose(out, ref, atol=1e-5, rtol=1e-5)

    print("KERNEL_OK")
</pallas_src>

<mosaic_0001>
module attributes {stable_mosaic.version = 11 : i64} {
  func.func @_sine_kernel(%arg0: i32, %arg1: memref<2xf32, #tpu.memory_space<smem>>, %arg2: memref<8x1024xf32, #tpu.memory_space<vmem>>, %arg3: memref<8x1024xf32, #tpu.memory_space<vmem>>) attributes {dimension_semantics = [#tpu.dimension_semantics<parallel>], iteration_bounds = array<i64: 1>, scalar_prefetch = 0 : i64, scratch_operands = 0 : i64, tpu.core_type = #tpu.core_type<tc>, window_params = [{transform_indices = @transform_0, window_bounds = array<i64: 2>}, {transform_indices = @transform_1, window_bounds = array<i64: 8, 1024>}, {transform_indices = @transform_2, window_bounds = array<i64: 8, 1024>}]} {
    %c0 = arith.constant 0 : index
    %0 = memref.load %arg1[%c0] : memref<2xf32, #tpu.memory_space<smem>>
    %c1 = arith.constant 1 : index
    %1 = memref.load %arg1[%c1] : memref<2xf32, #tpu.memory_space<smem>>
    %c0_0 = arith.constant 0 : index
    %c0_1 = arith.constant 0 : index
    %2 = vector.load %arg2[%c0_0, %c0_1] : memref<8x1024xf32, #tpu.memory_space<vmem>>, vector<8x1024xf32>
    %3 = vector.broadcast %0 : f32 to vector<8x1024xf32>
    %4 = arith.mulf %3, %2 : vector<8x1024xf32>
    %5 = vector.broadcast %1 : f32 to vector<8x1024xf32>
    %6 = arith.addf %4, %5 : vector<8x1024xf32>
    %7 = math.sin %6 : vector<8x1024xf32>
    %c0_2 = arith.constant 0 : index
    %c0_3 = arith.constant 0 : index
    %8 = vector.load %arg3[%c0_2, %c0_3] : memref<8x1024xf32, #tpu.memory_space<vmem>>, vector<8x1024xf32>
    tpu.vector_store %arg3[%c0_2, %c0_3], %7 {strides = array<i32>} : memref<8x1024xf32, #tpu.memory_space<vmem>>, vector<8x1024xf32>,
    return
  }
  func.func @transform_0(%arg0: i32) -> i32 {
    %c0_i32 = arith.constant 0 : i32
    %c0_i32_0 = arith.constant 0 : i32
    return %c0_i32 : i32
  }
  func.func @transform_1(%arg0: i32) -> (i32, i32) {
    %c0_i32 = arith.constant 0 : i32
    %c0_i32_0 = arith.constant 0 : i32
    return %arg0, %c0_i32 : i32, i32
  }
  func.func @transform_2(%arg0: i32) -> (i32, i32) {
    %c0_i32 = arith.constant 0 : i32
    %c0_i32_0 = arith.constant 0 : i32
    return %arg0, %c0_i32 : i32, i32
  }
}

</mosaic_0001>

<llo_original>
// kernel: tpu_custom_call.1
$region0: #{tpu_custom_call.1}
  #allocation0 [shape = 'u32[]', space=smem, size = 0x4, offset = 0x4, fixed_abs, tag = 'smem constant byte address 0x4 - core index']
  #allocation1 [shape = 'u32[144,128]{1,0:T(1,128)}', space=vmem, size = 0x12000, scoped, tag = 'internal scratch']
  %s0 = inlined_call_operand.hbm [shape: f32[2], index: 0, kind: input, shape index: {}]
  %s1 = inlined_call_operand.hbm [shape: f32[8,1024], index: 1, kind: input, shape index: {}]
  %s2 = inlined_call_operand.hbm [shape: f32[8,1024], index: 2, kind: output, shape index: {}]
  %s3 = sld [smem:[#allocation0]]
  $region26: #{tpu_custom_call.1} parent=0
    _
  %s5 = ssub.s32 1, %s3
  %s6 = scalar_select 0, %s5, %s3
  $region1: #{tpu_custom_call.1} parent=0
    #allocation2 [shape = 'u8[512]{0}', space=smem, size = 0x200, scoped, tag = 'input window, operand 0, single buffered']
    #allocation3 [shape = 's32[1]{0}', space=sflag, size = 0x4, scoped, tag = 'scoped memory for tpu_custom_call.1']
    #allocation4 [shape = 's32[1]{0}', space=sflag, size = 0x4, scoped, tag = 'scoped memory for tpu_custom_call.1']
    #allocation5 [shape = 's32[1]{0}', space=sflag, size = 0x4, scoped, tag = 'scoped memory for tpu_custom_call.1']
    #allocation6 [shape = 'u8[32768]{0}', space=vmem, size = 0x8000, scoped, tag = 'input window, operand 1, single buffered']
    #allocation7 [shape = 'u8[32768]{0}', space=vmem, size = 0x8000, scoped, tag = 'output window, operand 0, single buffered']
    %7 = vsyncpa [#allocation5], 0
    %8 = vsyncpa [#allocation3], 0
    %9 = vsyncpa [#allocation4], 0
    // Predicated region
    $region2: #{tpu_custom_call.1} parent=1 // pred_check
      _
    $region3: #{tpu_custom_call.1} parent=1 // pred_check_branch
      %11 = sbr.rel (0) target = $region5
    $region4: #{tpu_custom_call.1} parent=1 // pred_region
      %s13 = ssub.s32 16, 16
      %14 = vsyncadd [#allocation5], %s13
      %17 = dma.hbm_to_smem %s0, 16, [#allocation2], [#allocation5]
    $region5: #{tpu_custom_call.1} parent=1 // pred_fallthru
      _
    // Predicated region
    $region6: #{tpu_custom_call.1} parent=1 // pred_check
      _
    $region7: #{tpu_custom_call.1} parent=1 // pred_check_branch
      %19 = sbr.rel (0) target = $region9
    $region8: #{tpu_custom_call.1} parent=1 // pred_region
      %s21 = ssub.s32 1024, 1024
      %22 = vsyncadd [#allocation3], %s21
      %s24 = sshll.u32 [#allocation6], 4
      %s25 = int_to_ptr.vmem [resolvable:$true] %s24
      %27 = dma.hbm_to_vmem [thread:$0]  %s1, 1024, %s25, [#allocation3]
    $region9: #{tpu_custom_call.1} parent=1 // pred_fallthru
      _
    // Predicated region
    $region10: #{tpu_custom_call.1} parent=1 // pred_check
      _
    $region11: #{tpu_custom_call.1} parent=1 // pred_check_branch
      %29 = sbr.rel (0) target = $region13
    $region12: #{tpu_custom_call.1} parent=1 // pred_region
      %30 = dma.done [#allocation5], 16
    $region13: #{tpu_custom_call.1} parent=1 // pred_fallthru
      _
    // Predicated region
    $region14: #{tpu_custom_call.1} parent=1 // pred_check
      _
    $region15: #{tpu_custom_call.1} parent=1 // pred_check_branch
      %32 = sbr.rel (0) target = $region17
    $region16: #{tpu_custom_call.1} parent=1 // pred_region
      %33 = dma.done [#allocation3], 1024
    $region17: #{tpu_custom_call.1} parent=1 // pred_fallthru
      _
    %34 = sfence
    %s35 = sld [smem:[#allocation2]]
    %s36 = sld [smem:[#allocation2 + $0x1]]
    %v37 = vld [vmem:[#allocation6] sm:$0xff]
    %v38 = vld [vmem:[#allocation6 + $0x8] sm:$0xff]
    %v39 = vld [vmem:[#allocation6 + $0x10] sm:$0xff]
    %v40 = vld [vmem:[#allocation6 + $0x18] sm:$0xff]
    %v41 = vld [vmem:[#allocation6 + $0x20] sm:$0xff]
    %v42 = vld [vmem:[#allocation6 + $0x28] sm:$0xff]
    %v43 = vld [vmem:[#allocation6 + $0x30] sm:$0xff]
    %v44 = vld [vmem:[#allocation6 + $0x38] sm:$0xff]
    %v45 = vstv %s35
    %v46 = vmul.f32 %v45, %v37
    %v47 = vmul.f32 %v45, %v38
    %v48 = vmul.f32 %v45, %v39
    %v49 = vmul.f32 %v45, %v40
    %v50 = vmul.f32 %v45, %v41
    %v51 = vmul.f32 %v45, %v42
    %v52 = vmul.f32 %v45, %v43
    %v53 = vmul.f32 %v45, %v44
    %v54 = vstv %s36
    %v55 = vadd.f32 %v46, %v54
    %v56 = vadd.f32 %v47, %v54
    %v57 = vadd.f32 %v48, %v54
    %v58 = vadd.f32 %v49, %v54
    %v59 = vadd.f32 %v50, %v54
    %v60 = vadd.f32 %v51, %v54
    %v61 = vadd.f32 %v52, %v54
    %v62 = vadd.f32 %v53, %v54
    %v63 = vand.u32 2147483647, %v55
    %vm64 = vcmp.le.f32.partialorder %v63, 0.7853982
    %vm65 = vcmp.lt.s32.totalorder %v55, 0
    %v66 = vand.u32 %v55, 2139095040
    %v67 = vshrl.u32 %v66, 23
    %v68 = vsub.s32 %v67, 127
    %v69 = vand.u32 2147483647, %v55
    %v70 = vand.u32 %v69, 8388607
    %v71 = vor.u32 %v70, 8388608
    %v72 = vsub.s32 0, %v71
    %v73 = vadd.s32 %v68, 1
    %vm74 = vcmp.gt.s32.totalorder %v73, 0
    %v75 = vsel %vm74, %v73, 0
    %v76 = vshrl.u32 %v75, 5
    %v77 = vand.u32 %v75, 31
    %v78 = vsub.s32 32, %v77
    %v79 = vshrl.u32 683565275, %v78
    %v80 = vshll.u32 683565275, %v77
    %v81 = vshrl.u32 2475754826, %v78
    %v82 = vor.u32 %v80, %v81
    %v83 = vshll.u32 2475754826, %v77
    %v84 = vshrl.u32 2131351028, %v78
    %v85 = vor.u32 %v83, %v84
    %v86 = vshll.u32 2131351028, %v77
    %v87 = vshrl.u32 2102212464, %v78
    %v88 = vor.u32 %v86, %v87
    %v89 = vshll.u32 2102212464, %v77
    %v90 = vshrl.u32 920167782, %v78
    %v91 = vor.u32 %v89, %v90
    %v92 = vshll.u32 920167782, %v77
    %v93 = vshrl.u32 1326507024, %v78
    %v94 = vor.u32 %v92, %v93
    %vm95 = vcmp.lt.s32.totalorder %v76, 1
    %vm96 = vcmp.lt.s32.totalorder %v76, 2
    %vm97 = vcmp.lt.s32.totalorder %v76, 3
    %vm98 = vcmp.lt.s32.totalorder %v76, 4
    %v99 = vsel %vm95, %v79, %v82
    %v100 = vsel %vm98, %v88, 2102212464
    %v101 = vsel %vm97, %v85, %v100
    %v102 = vsel %vm96, %v99, %v101
    %v103 = vsel %vm95, %v82, %v85
    %v104 = vsel %vm98, %v91, 920167782
    %v105 = vsel %vm97, %v88, %v104
    %v106 = vsel %vm96, %v103, %v105
    %v107 = vsel %vm95, %v85, %v88
    %v108 = vsel %vm98, %v94, 1326507024
    %v109 = vsel %vm97, %v91, %v108
    %v110 = vsel %vm96, %v107, %v109
    %v111 = vshll.u32 %v71, 8
    %v112 = vmul.u32.u64.compose %v111, %v110
    %v113 = vextract.low.u32 %v112
    %v114 = vextract.high.u32 %v112
    %v115 = vmul.u32.u64.compose %v111, %v106
    %v116 = vextract.low.u32 %v115
    %v117 = vextract.high.u32 %v115
    %v118 = vmul.u32 %v111, %v102
    %v119 = vadd.s32 %v114, %v116
    %vm120 = vc.u32 %v114, %v116
    %v121 = vadd.s32 %v117, 1
    %v122 = vsel %vm120, %v121, %v117
    %v123 = vadd.s32 %v118, %v122
    %v124 = vadd.s32 %v123, 536870912
    %v125 = vshrl.u32 %v124, 30
    %v126 = vshll.u32 %v125, 30
    %v127 = vsub.s32 %v123, %v126
    %vm128 = vcmp.lt.s32.totalorder %v127, 0
    %v129 = vsub.s32 0, %v127
    %v130 = vsel %vm128, %v129, %v127
    %v131 = vclz %v130
    %v132 = vsub.s32 %v131, 2
    %vm133 = vcmp.gt.s32.totalorder 0, %v132
    %v134 = vsel %vm133, 0, %v132
    %v135 = vsub.s32 32, %v134
    %v136 = vshll.u32 %v127, %v134
    %v137 = vshrl.u32 %v119, %v135
    %v138 = vor.u32 %v136, %v137
    %v139 = vsub.s32 4294967266, %v134
    %v140 = vadd.s32 %v139, 127
    %v141 = vshll.u32 %v140, 23
    %v142 = vor.u32 4788187, %v141
    %v143 = vand.u32 2147483647, %v142
    %v145 = vcvt.s32.f32 %v138
    %v146 = vmul.f32 %v145, %v143
    %v147 = vxor.u32 %v146, 2147483648
    %v148 = vsel %vm65, %v147, %v146
    %v149 = vsub.s32 4, %v125
    %v150 = vsel %vm65, %v149, %v125
    %v151 = vsel %vm64, %v55, %v148
    %v152 = vsel %vm64, 0, %v150
    %v153 = vcosq.f32.pop %v151
    %v154 = vsinq.f32.pop %v151
    %vm155 = vweird.f32 %v55
    %v156 = vadd.s32 %v152, 3
    %v157 = vand.u32 %v156, 3
    %vm158 = vcmp.lt.s32.totalorder %v157, 2
    %vm159 = vcmp.eq.s32.totalorder %v157, 0
    %v160 = vxor.u32 %v154, 2147483648
    %v161 = vsel %vm159, %v153, %v160
    %vm162 = vcmp.eq.s32.totalorder %v157, 2
    %v163 = vxor.u32 %v153, 2147483648
    %v164 = vsel %vm162, %v163, %v154
    %v165 = vsel %vm158, %v161, %v164
    %v166 = vsel %vm155, nan, %v165
    %v167 = vand.u32 2147483647, %v56
    %vm168 = vcmp.le.f32.partialorder %v167, 0.7853982
    %vm169 = vcmp.lt.s32.totalorder %v56, 0
    %v170 = vand.u32 %v56, 2139095040
    %v171 = vshrl.u32 %v170, 23
    %v172 = vsub.s32 %v171, 127
    %v173 = vand.u32 2147483647, %v56
    %v174 = vand.u32 %v173, 8388607
    %v175 = vor.u32 %v174, 8388608
    %v176 = vsub.s32 0, %v175
    %v177 = vadd.s32 %v172, 1
    %vm178 = vcmp.gt.s32.totalorder %v177, 0
    %v179 = vsel %vm178, %v177, 0
    %v180 = vshrl.u32 %v179, 5
    %v181 = vand.u32 %v179, 31
    %v182 = vsub.s32 32, %v181
    %v183 = vshrl.u32 683565275, %v182
    %v184 = vshll.u32 683565275, %v181
    %v185 = vshrl.u32 2475754826, %v182
    %v186 = vor.u32 %v184, %v185
    %v187 = vshll.u32 2475754826, %v181
    %v188 = vshrl.u32 2131351028, %v182
    %v189 = vor.u32 %v187, %v188
    %v190 = vshll.u32 2131351028, %v181
    %v191 = vshrl.u32 2102212464, %v182
    %v192 = vor.u32 %v190, %v191
    %v193 = vshll.u32 2102212464, %v181
    %v194 = vshrl.u32 920167782, %v182
    %v195 = vor.u32 %v193, %v194
    %v196 = vshll.u32 920167782, %v181
    %v197 = vshrl.u32 1326507024, %v182
    %v198 = vor.u32 %v196, %v197
    %vm199 = vcmp.lt.s32.totalorder %v180, 1
    %vm200 = vcmp.lt.s32.totalorder %v180, 2
    %vm201 = vcmp.lt.s32.totalorder %v180, 3
    %vm202 = vcmp.lt.s32.totalorder %v180, 4
    %v203 = vsel %vm199, %v183, %v186
    %v204 = vsel %vm202, %v192, 2102212464
    %v205 = vsel %vm201, %v189, %v204
    %v206 = vsel %vm200, %v203, %v205
    %v207 = vsel %vm199, %v186, %v189
    %v208 = vsel %vm202, %v195, 920167782
    %v209 = vsel %vm201, %v192, %v208
    %v210 = vsel %vm200, %v207, %v209
    %v211 = vsel %vm199, %v189, %v192
    %v212 = vsel %vm202, %v198, 1326507024
    %v213 = vsel %vm201, %v195, %v212
    %v214 = vsel %vm200, %v211, %v213
    %v215 = vshll.u32 %v175, 8
    %v216 = vmul.u32.u64.compose %v215, %v214
    %v217 = vextract.low.u32 %v216
    %v218 = vextract.high.u32 %v216
    %v219 = vmul.u32.u64.compose %v215, %v210
    %v220 = vextract.low.u32 %v219
    %v221 = vextract.high.u32 %v219
    %v222 = vmul.u32 %v215, %v206
    %v223 = vadd.s32 %v218, %v220
    %vm224 = vc.u32 %v218, %v220
    %v225 = vadd.s32 %v221, 1
    %v226 = vsel %vm224, %v225, %v221
    %v227 = vadd.s32 %v222, %v226
    %v228 = vadd.s32 %v227, 536870912
    %v229 = vshrl.u32 %v228, 30
    %v230 = vshll.u32 %v229, 30
    %v231 = vsub.s32 %v227, %v230
    %vm232 = vcmp.lt.s32.totalorder %v231, 0
    %v233 = vsub.s32 0, %v231
    %v234 = vsel %vm232, %v233, %v231
    %v235 = vclz %v234
    %v236 = vsub.s32 %v235, 2
    %vm237 = vcmp.gt.s32.totalorder 0, %v236
    %v238 = vsel %vm237, 0, %v236
    %v239 = vsub.s32 32, %v238
    %v240 = vshll.u32 %v231, %v238
    %v241 = vshrl.u32 %v223, %v239
    %v242 = vor.u32 %v240, %v241
    %v243 = vsub.s32 4294967266, %v238
    %v244 = vadd.s32 %v243, 127
    %v245 = vshll.u32 %v244, 23
    %v246 = vor.u32 4788187, %v245
    %v247 = vand.u32 2147483647, %v246
    %v249 = vcvt.s32.f32 %v242
    %v250 = vmul.f32 %v249, %v247
    %v251 = vxor.u32 %v250, 2147483648
    %v252 = vsel %vm169, %v251, %v250
    %v253 = vsub.s32 4, %v229
    %v254 = vsel %vm169, %v253, %v229
    %v255 = vsel %vm168, %v56, %v252
    %v256 = vsel %vm168, 0, %v254
    %v257 = vcosq.f32.pop %v255
    %v258 = vsinq.f32.pop %v255
    %vm259 = vweird.f32 %v56
    %v260 = vadd.s32 %v256, 3
    %v261 = vand.u32 %v260, 3
    %vm262 = vcmp.lt.s32.totalorder %v261, 2
    %vm263 = vcmp.eq.s32.totalorder %v261, 0
    %v264 = vxor.u32 %v258, 2147483648
    %v265 = vsel %vm263, %v257, %v264
    %vm266 = vcmp.eq.s32.totalorder %v261, 2
    %v267 = vxor.u32 %v257, 2147483648
    %v268 = vsel %vm266, %v267, %v258
    %v269 = vsel %vm262, %v265, %v268
    %v270 = vsel %vm259, nan, %v269
    %v271 = vand.u32 2147483647, %v57
    %vm272 = vcmp.le.f32.partialorder %v271, 0.7853982
    %vm273 = vcmp.lt.s32.totalorder %v57, 0
    %v274 = vand.u32 %v57, 2139095040
    %v275 = vshrl.u32 %v274, 23
    %v276 = vsub.s32 %v275, 127
    %v277 = vand.u32 2147483647, %v57
    %v278 = vand.u32 %v277, 8388607
    %v279 = vor.u32 %v278, 8388608
    %v280 = vsub.s32 0, %v279
    %v281 = vadd.s32 %v276, 1
    %vm282 = vcmp.gt.s32.totalorder %v281, 0
    %v283 = vsel %vm282, %v281, 0
    %v284 = vshrl.u32 %v283, 5
    %v285 = vand.u32 %v283, 31
    %v286 = vsub.s32 32, %v285
    %v287 = vshrl.u32 683565275, %v286
    %v288 = vshll.u32 683565275, %v285
    %v289 = vshrl.u32 2475754826, %v286
    %v290 = vor.u32 %v288, %v289
    %v291 = vshll.u32 2475754826, %v285
    %v292 = vshrl.u32 2131351028, %v286
    %v293 = vor.u32 %v291, %v292
    %v294 = vshll.u32 2131351028, %v285
    %v295 = vshrl.u32 2102212464, %v286
    %v296 = vor.u32 %v294, %v295
    %v297 = vshll.u32 2102212464, %v285
    %v298 = vshrl.u32 920167782, %v286
    %v299 = vor.u32 %v297, %v298
    %v300 = vshll.u32 920167782, %v285
    %v301 = vshrl.u32 1326507024, %v286
    %v302 = vor.u32 %v300, %v301
    %vm303 = vcmp.lt.s32.totalorder %v284, 1
    %vm304 = vcmp.lt.s32.totalorder %v284, 2
    %vm305 = vcmp.lt.s32.totalorder %v284, 3
    %vm306 = vcmp.lt.s32.totalorder %v284, 4
    %v307 = vsel %vm303, %v287, %v290
    %v308 = vsel %vm306, %v296, 2102212464
    %v309 = vsel %vm305, %v293, %v308
    %v310 = vsel %vm304, %v307, %v309
    %v311 = vsel %vm303, %v290, %v293
    %v312 = vsel %vm306, %v299, 920167782
    %v313 = vsel %vm305, %v296, %v312
    %v314 = vsel %vm304, %v311, %v313
    %v315 = vsel %vm303, %v293, %v296
    %v316 = vsel %vm306, %v302, 1326507024
    %v317 = vsel %vm305, %v299, %v316
    %v318 = vsel %vm304, %v315, %v317
    %v319 = vshll.u32 %v279, 8
    %v320 = vmul.u32.u64.compose %v319, %v318
    %v321 = vextract.low.u32 %v320
    %v322 = vextract.high.u32 %v320
    %v323 = vmul.u32.u64.compose %v319, %v314
    %v324 = vextract.low.u32 %v323
    %v325 = vextract.high.u32 %v323
    %v326 = vmul.u32 %v319, %v310
    %v327 = vadd.s32 %v322, %v324
    %vm328 = vc.u32 %v322, %v324
    %v329 = vadd.s32 %v325, 1
    %v330 = vsel %vm328, %v329, %v325
    %v331 = vadd.s32 %v326, %v330
    %v332 = vadd.s32 %v331, 536870912
    %v333 = vshrl.u32 %v332, 30
    %v334 = vshll.u32 %v333, 30
    %v335 = vsub.s32 %v331, %v334
    %vm336 = vcmp.lt.s32.totalorder %v335, 0
    %v337 = vsub.s32 0, %v335
    %v338 = vsel %vm336, %v337, %v335
    %v339 = vclz %v338
    %v340 = vsub.s32 %v339, 2
    %vm341 = vcmp.gt.s32.totalorder 0, %v340
    %v342 = vsel %vm341, 0, %v340
    %v343 = vsub.s32 32, %v342
    %v344 = vshll.u32 %v335, %v342
    %v345 = vshrl.u32 %v327, %v343
    %v346 = vor.u32 %v344, %v345
    %v347 = vsub.s32 4294967266, %v342
    %v348 = vadd.s32 %v347, 127
    %v349 = vshll.u32 %v348, 23
    %v350 = vor.u32 4788187, %v349
    %v351 = vand.u32 2147483647, %v350
    %v353 = vcvt.s32.f32 %v346
    %v354 = vmul.f32 %v353, %v351
    %v355 = vxor.u32 %v354, 2147483648
    %v356 = vsel %vm273, %v355, %v354
    %v357 = vsub.s32 4, %v333
    %v358 = vsel %vm273, %v357, %v333
    %v359 = vsel %vm272, %v57, %v356
    %v360 = vsel %vm272, 0, %v358
    %v361 = vcosq.f32.pop %v359
    %v362 = vsinq.f32.pop %v359
    %vm363 = vweird.f32 %v57
    %v364 = vadd.s32 %v360, 3
    %v365 = vand.u32 %v364, 3
    %vm366 = vcmp.lt.s32.totalorder %v365, 2
    %vm367 = vcmp.eq.s32.totalorder %v365, 0
    %v368 = vxor.u32 %v362, 2147483648
    %v369 = vsel %vm367, %v361, %v368
    %vm370 = vcmp.eq.s32.totalorder %v365, 2
    %v371 = vxor.u32 %v361, 2147483648
    %v372 = vsel %vm370, %v371, %v362
    %v373 = vsel %vm366, %v369, %v372
    %v374 = vsel %vm363, nan, %v373
    %v375 = vand.u32 2147483647, %v58
    %vm376 = vcmp.le.f32.partialorder %v375, 0.7853982
    %vm377 = vcmp.lt.s32.totalorder %v58, 0
    %v378 = vand.u32 %v58, 2139095040
    %v379 = vshrl.u32 %v378, 23
    %v380 = vsub.s32 %v379, 127
    %v381 = vand.u32 2147483647, %v58
    %v382 = vand.u32 %v381, 8388607
    %v383 = vor.u32 %v382, 8388608
    %v384 = vsub.s32 0, %v383
    %v385 = vadd.s32 %v380, 1
    %vm386 = vcmp.gt.s32.totalorder %v385, 0
    %v387 = vsel %vm386, %v385, 0
    %v388 = vshrl.u32 %v387, 5
    %v389 = vand.u32 %v387, 31
    %v390 = vsub.s32 32, %v389
    %v391 = vshrl.u32 683565275, %v390
    %v392 = vshll.u32 683565275, %v389
    %v393 = vshrl.u32 2475754826, %v390
    %v394 = vor.u32 %v392, %v393
    %v395 = vshll.u32 2475754826, %v389
    %v396 = vshrl.u32 2131351028, %v390
    %v397 = vor.u32 %v395, %v396
    %v398 = vshll.u32 2131351028, %v389
    %v399 = vshrl.u32 2102212464, %v390
    %v400 = vor.u32 %v398, %v399
    %v401 = vshll.u32 2102212464, %v389
    %v402 = vshrl.u32 920167782, %v390
    %v403 = vor.u32 %v401, %v402
    %v404 = vshll.u32 920167782, %v389
    %v405 = vshrl.u32 1326507024, %v390
    %v406 = vor.u32 %v404, %v405
    %vm407 = vcmp.lt.s32.totalorder %v388, 1
    %vm408 = vcmp.lt.s32.totalorder %v388, 2
    %vm409 = vcmp.lt.s32.totalorder %v388, 3
    %vm410 = vcmp.lt.s32.totalorder %v388, 4
    %v411 = vsel %vm407, %v391, %v394
    %v412 = vsel %vm410, %v400, 2102212464
    %v413 = vsel %vm409, %v397, %v412
    %v414 = vsel %vm408, %v411, %v413
    %v415 = vsel %vm407, %v394, %v397
    %v416 = vsel %vm410, %v403, 920167782
    %v417 = vsel %vm409, %v400, %v416
    %v418 = vsel %vm408, %v415, %v417
    %v419 = vsel %vm407, %v397, %v400
    %v420 = vsel %vm410, %v406, 1326507024
    %v421 = vsel %vm409, %v403, %v420
    %v422 = vsel %vm408, %v419, %v421
    %v423 = vshll.u32 %v383, 8
    %v424 = vmul.u32.u64.compose %v423, %v422
    %v425 = vextract.low.u32 %v424
    %v426 = vextract.high.u32 %v424
    %v427 = vmul.u32.u64.compose %v423, %v418
    %v428 = vextract.low.u32 %v427
    %v429 = vextract.high.u32 %v427
    %v430 = vmul.u32 %v423, %v414
    %v431 = vadd.s32 %v426, %v428
    %vm432 = vc.u32 %v426, %v428
    %v433 = vadd.s32 %v429, 1
    %v434 = vsel %vm432, %v433, %v429
    %v435 = vadd.s32 %v430, %v434
    %v436 = vadd.s32 %v435, 536870912
    %v437 = vshrl.u32 %v436, 30
    %v438 = vshll.u32 %v437, 30
    %v439 = vsub.s32 %v435, %v438
    %vm440 = vcmp.lt.s32.totalorder %v439, 0
    %v441 = vsub.s32 0, %v439
    %v442 = vsel %vm440, %v441, %v439
    %v443 = vclz %v442
    %v444 = vsub.s32 %v443, 2
    %vm445 = vcmp.gt.s32.totalorder 0, %v444
    %v446 = vsel %vm445, 0, %v444
    %v447 = vsub.s32 32, %v446
    %v448 = vshll.u32 %v439, %v446
    %v449 = vshrl.u32 %v431, %v447
    %v450 = vor.u32 %v448, %v449
    %v451 = vsub.s32 4294967266, %v446
    %v452 = vadd.s32 %v451, 127
    %v453 = vshll.u32 %v452, 23
    %v454 = vor.u32 4788187, %v453
    %v455 = vand.u32 2147483647, %v454
    %v457 = vcvt.s32.f32 %v450
    %v458 = vmul.f32 %v457, %v455
    %v459 = vxor.u32 %v458, 2147483648
    %v460 = vsel %vm377, %v459, %v458
    %v461 = vsub.s32 4, %v437
    %v462 = vsel %vm377, %v461, %v437
    %v463 = vsel %vm376, %v58, %v460
    %v464 = vsel %vm376, 0, %v462
    %v465 = vcosq.f32.pop %v463
    %v466 = vsinq.f32.pop %v463
    %vm467 = vweird.f32 %v58
    %v468 = vadd.s32 %v464, 3
    %v469 = vand.u32 %v468, 3
    %vm470 = vcmp.lt.s32.totalorder %v469, 2
    %vm471 = vcmp.eq.s32.totalorder %v469, 0
    %v472 = vxor.u32 %v466, 2147483648
    %v473 = vsel %vm471, %v465, %v472
    %vm474 = vcmp.eq.s32.totalorder %v469, 2
    %v475 = vxor.u32 %v465, 2147483648
    %v476 = vsel %vm474, %v475, %v466
    %v477 = vsel %vm470, %v473, %v476
    %v478 = vsel %vm467, nan, %v477
    %v479 = vand.u32 2147483647, %v59
    %vm480 = vcmp.le.f32.partialorder %v479, 0.7853982
    %vm481 = vcmp.lt.s32.totalorder %v59, 0
    %v482 = vand.u32 %v59, 2139095040
    %v483 = vshrl.u32 %v482, 23
    %v484 = vsub.s32 %v483, 127
    %v485 = vand.u32 2147483647, %v59
    %v486 = vand.u32 %v485, 8388607
    %v487 = vor.u32 %v486, 8388608
    %v488 = vsub.s32 0, %v487
    %v489 = vadd.s32 %v484, 1
    %vm490 = vcmp.gt.s32.totalorder %v489, 0
    %v491 = vsel %vm490, %v489, 0
    %v492 = vshrl.u32 %v491, 5
    %v493 = vand.u32 %v491, 31
    %v494 = vsub.s32 32, %v493
    %v495 = vshrl.u32 683565275, %v494
    %v496 = vshll.u32 683565275, %v493
    %v497 = vshrl.u32 2475754826, %v494
    %v498 = vor.u32 %v496, %v497
    %v499 = vshll.u32 2475754826, %v493
    %v500 = vshrl.u32 2131351028, %v494
    %v501 = vor.u32 %v499, %v500
    %v502 = vshll.u32 2131351028, %v493
    %v503 = vshrl.u32 2102212464, %v494
    %v504 = vor.u32 %v502, %v503
    %v505 = vshll.u32 2102212464, %v493
    %v506 = vshrl.u32 920167782, %v494
    %v507 = vor.u32 %v505, %v506
    %v508 = vshll.u32 920167782, %v493
    %v509 = vshrl.u32 1326507024, %v494
    %v510 = vor.u32 %v508, %v509
    %vm511 = vcmp.lt.s32.totalorder %v492, 1
    %vm512 = vcmp.lt.s32.totalorder %v492, 2
    %vm513 = vcmp.lt.s32.totalorder %v492, 3
    %vm514 = vcmp.lt.s32.totalorder %v492, 4
    %v515 = vsel %vm511, %v495, %v498
    %v516 = vsel %vm514, %v504, 2102212464
    %v517 = vsel %vm513, %v501, %v516
    %v518 = vsel %vm512, %v515, %v517
    %v519 = vsel %vm511, %v498, %v501
    %v520 = vsel %vm514, %v507, 920167782
    %v521 = vsel %vm513, %v504, %v520
    %v522 = vsel %vm512, %v519, %v521
    %v523 = vsel %vm511, %v501, %v504
    %v524 = vsel %vm514, %v510, 1326507024
    %v525 = vsel %vm513, %v507, %v524
    %v526 = vsel %vm512, %v523, %v525
    %v527 = vshll.u32 %v487, 8
    %v528 = vmul.u32.u64.compose %v527, %v526
    %v529 = vextract.low.u32 %v528
    %v530 = vextract.high.u32 %v528
    %v531 = vmul.u32.u64.compose %v527, %v522
    %v532 = vextract.low.u32 %v531
    %v533 = vextract.high.u32 %v531
    %v534 = vmul.u32 %v527, %v518
    %v535 = vadd.s32 %v530, %v532
    %vm536 = vc.u32 %v530, %v532
    %v537 = vadd.s32 %v533, 1
    %v538 = vsel %vm536, %v537, %v533
    %v539 = vadd.s32 %v534, %v538
    %v540 = vadd.s32 %v539, 536870912
    %v541 = vshrl.u32 %v540, 30
    %v542 = vshll.u32 %v541, 30
    %v543 = vsub.s32 %v539, %v542
    %vm544 = vcmp.lt.s32.totalorder %v543, 0
    %v545 = vsub.s32 0, %v543
    %v546 = vsel %vm544, %v545, %v543
    %v547 = vclz %v546
    %v548 = vsub.s32 %v547, 2
    %vm549 = vcmp.gt.s32.totalorder 0, %v548
    %v550 = vsel %vm549, 0, %v548
    %v551 = vsub.s32 32, %v550
    %v552 = vshll.u32 %v543, %v550
    %v553 = vshrl.u32 %v535, %v551
    %v554 = vor.u32 %v552, %v553
    %v555 = vsub.s32 4294967266, %v550
    %v556 = vadd.s32 %v555, 127
    %v557 = vshll.u32 %v556, 23
    %v558 = vor.u32 4788187, %v557
    %v559 = vand.u32 2147483647, %v558
    %v561 = vcvt.s32.f32 %v554
    %v562 = vmul.f32 %v561, %v559
    %v563 = vxor.u32 %v562, 2147483648
    %v564 = vsel %vm481, %v563, %v562
    %v565 = vsub.s32 4, %v541
    %v566 = vsel %vm481, %v565, %v541
    %v567 = vsel %vm480, %v59, %v564
    %v568 = vsel %vm480, 0, %v566
    %v569 = vcosq.f32.pop %v567
    %v570 = vsinq.f32.pop %v567
    %vm571 = vweird.f32 %v59
    %v572 = vadd.s32 %v568, 3
    %v573 = vand.u32 %v572, 3
    %vm574 = vcmp.lt.s32.totalorder %v573, 2
    %vm575 = vcmp.eq.s32.totalorder %v573, 0
    %v576 = vxor.u32 %v570, 2147483648
    %v577 = vsel %vm575, %v569, %v576
    %vm578 = vcmp.eq.s32.totalorder %v573, 2
    %v579 = vxor.u32 %v569, 2147483648
    %v580 = vsel %vm578, %v579, %v570
    %v581 = vsel %vm574, %v577, %v580
    %v582 = vsel %vm571, nan, %v581
    %v583 = vand.u32 2147483647, %v60
    %vm584 = vcmp.le.f32.partialorder %v583, 0.7853982
    %vm585 = vcmp.lt.s32.totalorder %v60, 0
    %v586 = vand.u32 %v60, 2139095040
    %v587 = vshrl.u32 %v586, 23
    %v588 = vsub.s32 %v587, 127
    %v589 = vand.u32 2147483647, %v60
    %v590 = vand.u32 %v589, 8388607
    %v591 = vor.u32 %v590, 8388608
    %v592 = vsub.s32 0, %v591
    %v593 = vadd.s32 %v588, 1
    %vm594 = vcmp.gt.s32.totalorder %v593, 0
    %v595 = vsel %vm594, %v593, 0
    %v596 = vshrl.u32 %v595, 5
    %v597 = vand.u32 %v595, 31
    %v598 = vsub.s32 32, %v597
    %v599 = vshrl.u32 683565275, %v598
    %v600 = vshll.u32 683565275, %v597
    %v601 = vshrl.u32 2475754826, %v598
    %v602 = vor.u32 %v600, %v601
    %v603 = vshll.u32 2475754826, %v597
    %v604 = vshrl.u32 2131351028, %v598
    %v605 = vor.u32 %v603, %v604
    %v606 = vshll.u32 2131351028, %v597
    %v607 = vshrl.u32 2102212464, %v598
    %v608 = vor.u32 %v606, %v607
    %v609 = vshll.u32 2102212464, %v597
    %v610 = vshrl.u32 920167782, %v598
    %v611 = vor.u32 %v609, %v610
    %v612 = vshll.u32 920167782, %v597
    %v613 = vshrl.u32 1326507024, %v598
    %v614 = vor.u32 %v612, %v613
    %vm615 = vcmp.lt.s32.totalorder %v596, 1
    %vm616 = vcmp.lt.s32.totalorder %v596, 2
    %vm617 = vcmp.lt.s32.totalorder %v596, 3
    %vm618 = vcmp.lt.s32.totalorder %v596, 4
    %v619 = vsel %vm615, %v599, %v602
    %v620 = vsel %vm618, %v608, 2102212464
    %v621 = vsel %vm617, %v605, %v620
    %v622 = vsel %vm616, %v619, %v621
    %v623 = vsel %vm615, %v602, %v605
    %v624 = vsel %vm618, %v611, 920167782
    %v625 = vsel %vm617, %v608, %v624
    %v626 = vsel %vm616, %v623, %v625
    %v627 = vsel %vm615, %v605, %v608
    %v628 = vsel %vm618, %v614, 1326507024
    %v629 = vsel %vm617, %v611, %v628
    %v630 = vsel %vm616, %v627, %v629
    %v631 = vshll.u32 %v591, 8
    %v632 = vmul.u32.u64.compose %v631, %v630
    %v633 = vextract.low.u32 %v632
    %v634 = vextract.high.u32 %v632
    %v635 = vmul.u32.u64.compose %v631, %v626
    %v636 = vextract.low.u32 %v635
    %v637 = vextract.high.u32 %v635
    %v638 = vmul.u32 %v631, %v622
    %v639 = vadd.s32 %v634, %v636
    %vm640 = vc.u32 %v634, %v636
    %v641 = vadd.s32 %v637, 1
    %v642 = vsel %vm640, %v641, %v637
    %v643 = vadd.s32 %v638, %v642
    %v644 = vadd.s32 %v643, 536870912
    %v645 = vshrl.u32 %v644, 30
    %v646 = vshll.u32 %v645, 30
    %v647 = vsub.s32 %v643, %v646
    %vm648 = vcmp.lt.s32.totalorder %v647, 0
    %v649 = vsub.s32 0, %v647
    %v650 = vsel %vm648, %v649, %v647
    %v651 = vclz %v650
    %v652 = vsub.s32 %v651, 2
    %vm653 = vcmp.gt.s32.totalorder 0, %v652
    %v654 = vsel %vm653, 0, %v652
    %v655 = vsub.s32 32, %v654
    %v656 = vshll.u32 %v647, %v654
    %v657 = vshrl.u32 %v639, %v655
    %v658 = vor.u32 %v656, %v657
    %v659 = vsub.s32 4294967266, %v654
    %v660 = vadd.s32 %v659, 127
    %v661 = vshll.u32 %v660, 23
    %v662 = vor.u32 4788187, %v661
    %v663 = vand.u32 2147483647, %v662
    %v665 = vcvt.s32.f32 %v658
    %v666 = vmul.f32 %v665, %v663
    %v667 = vxor.u32 %v666, 2147483648
    %v668 = vsel %vm585, %v667, %v666
    %v669 = vsub.s32 4, %v645
    %v670 = vsel %vm585, %v669, %v645
    %v671 = vsel %vm584, %v60, %v668
    %v672 = vsel %vm584, 0, %v670
    %v673 = vcosq.f32.pop %v671
    %v674 = vsinq.f32.pop %v671
    %vm675 = vweird.f32 %v60
    %v676 = vadd.s32 %v672, 3
    %v677 = vand.u32 %v676, 3
    %vm678 = vcmp.lt.s32.totalorder %v677, 2
    %vm679 = vcmp.eq.s32.totalorder %v677, 0
    %v680 = vxor.u32 %v674, 2147483648
    %v681 = vsel %vm679, %v673, %v680
    %vm682 = vcmp.eq.s32.totalorder %v677, 2
    %v683 = vxor.u32 %v673, 2147483648
    %v684 = vsel %vm682, %v683, %v674
    %v685 = vsel %vm678, %v681, %v684
    %v686 = vsel %vm675, nan, %v685
    %v687 = vand.u32 2147483647, %v61
    %vm688 = vcmp.le.f32.partialorder %v687, 0.7853982
    %vm689 = vcmp.lt.s32.totalorder %v61, 0
    %v690 = vand.u32 %v61, 2139095040
    %v691 = vshrl.u32 %v690, 23
    %v692 = vsub.s32 %v691, 127
    %v693 = vand.u32 2147483647, %v61
    %v694 = vand.u32 %v693, 8388607
    %v695 = vor.u32 %v694, 8388608
    %v696 = vsub.s32 0, %v695
    %v697 = vadd.s32 %v692, 1
    %vm698 = vcmp.gt.s32.totalorder %v697, 0
    %v699 = vsel %vm698, %v697, 0
    %v700 = vshrl.u32 %v699, 5
    %v701 = vand.u32 %v699, 31
    %v702 = vsub.s32 32, %v701
    %v703 = vshrl.u32 683565275, %v702
    %v704 = vshll.u32 683565275, %v701
    %v705 = vshrl.u32 2475754826, %v702
    %v706 = vor.u32 %v704, %v705
    %v707 = vshll.u32 2475754826, %v701
    %v708 = vshrl.u32 2131351028, %v702
    %v709 = vor.u32 %v707, %v708
    %v710 = vshll.u32 2131351028, %v701
    %v711 = vshrl.u32 2102212464, %v702
    %v712 = vor.u32 %v710, %v711
    %v713 = vshll.u32 2102212464, %v701
    %v714 = vshrl.u32 920167782, %v702
    %v715 = vor.u32 %v713, %v714
    %v716 = vshll.u32 920167782, %v701
    %v717 = vshrl.u32 1326507024, %v702
    %v718 = vor.u32 %v716, %v717
    %vm719 = vcmp.lt.s32.totalorder %v700, 1
    %vm720 = vcmp.lt.s32.totalorder %v700, 2
    %vm721 = vcmp.lt.s32.totalorder %v700, 3
    %vm722 = vcmp.lt.s32.totalorder %v700, 4
    %v723 = vsel %vm719, %v703, %v706
    %v724 = vsel %vm722, %v712, 2102212464
    %v725 = vsel %vm721, %v709, %v724
    %v726 = vsel %vm720, %v723, %v725
    %v727 = vsel %vm719, %v706, %v709
    %v728 = vsel %vm722, %v715, 920167782
    %v729 = vsel %vm721, %v712, %v728
    %v730 = vsel %vm720, %v727, %v729
    %v731 = vsel %vm719, %v709, %v712
    %v732 = vsel %vm722, %v718, 1326507024
    %v733 = vsel %vm721, %v715, %v732
    %v734 = vsel %vm720, %v731, %v733
    %v735 = vshll.u32 %v695, 8
    %v736 = vmul.u32.u64.compose %v735, %v734
    %v737 = vextract.low.u32 %v736
    %v738 = vextract.high.u32 %v736
    %v739 = vmul.u32.u64.compose %v735, %v730
    %v740 = vextract.low.u32 %v739
    %v741 = vextract.high.u32 %v739
    %v742 = vmul.u32 %v735, %v726
    %v743 = vadd.s32 %v738, %v740
    %vm744 = vc.u32 %v738, %v740
    %v745 = vadd.s32 %v741, 1
    %v746 = vsel %vm744, %v745, %v741
    %v747 = vadd.s32 %v742, %v746
    %v748 = vadd.s32 %v747, 536870912
    %v749 = vshrl.u32 %v748, 30
    %v750 = vshll.u32 %v749, 30
    %v751 = vsub.s32 %v747, %v750
    %vm752 = vcmp.lt.s32.totalorder %v751, 0
    %v753 = vsub.s32 0, %v751
    %v754 = vsel %vm752, %v753, %v751
    %v755 = vclz %v754
    %v756 = vsub.s32 %v755, 2
    %vm757 = vcmp.gt.s32.totalorder 0, %v756
    %v758 = vsel %vm757, 0, %v756
    %v759 = vsub.s32 32, %v758
    %v760 = vshll.u32 %v751, %v758
    %v761 = vshrl.u32 %v743, %v759
    %v762 = vor.u32 %v760, %v761
    %v763 = vsub.s32 4294967266, %v758
    %v764 = vadd.s32 %v763, 127
    %v765 = vshll.u32 %v764, 23
    %v766 = vor.u32 4788187, %v765
    %v767 = vand.u32 2147483647, %v766
    %v769 = vcvt.s32.f32 %v762
    %v770 = vmul.f32 %v769, %v767
    %v771 = vxor.u32 %v770, 2147483648
    %v772 = vsel %vm689, %v771, %v770
    %v773 = vsub.s32 4, %v749
    %v774 = vsel %vm689, %v773, %v749
    %v775 = vsel %vm688, %v61, %v772
    %v776 = vsel %vm688, 0, %v774
    %v777 = vcosq.f32.pop %v775
    %v778 = vsinq.f32.pop %v775
    %vm779 = vweird.f32 %v61
    %v780 = vadd.s32 %v776, 3
    %v781 = vand.u32 %v780, 3
    %vm782 = vcmp.lt.s32.totalorder %v781, 2
    %vm783 = vcmp.eq.s32.totalorder %v781, 0
    %v784 = vxor.u32 %v778, 2147483648
    %v785 = vsel %vm783, %v777, %v784
    %vm786 = vcmp.eq.s32.totalorder %v781, 2
    %v787 = vxor.u32 %v777, 2147483648
    %v788 = vsel %vm786, %v787, %v778
    %v789 = vsel %vm782, %v785, %v788
    %v790 = vsel %vm779, nan, %v789
    %v791 = vand.u32 2147483647, %v62
    %vm792 = vcmp.le.f32.partialorder %v791, 0.7853982
    %vm793 = vcmp.lt.s32.totalorder %v62, 0
    %v794 = vand.u32 %v62, 2139095040
    %v795 = vshrl.u32 %v794, 23
    %v796 = vsub.s32 %v795, 127
    %v797 = vand.u32 2147483647, %v62
    %v798 = vand.u32 %v797, 8388607
    %v799 = vor.u32 %v798, 8388608
    %v800 = vsub.s32 0, %v799
    %v801 = vadd.s32 %v796, 1
    %vm802 = vcmp.gt.s32.totalorder %v801, 0
    %v803 = vsel %vm802, %v801, 0
    %v804 = vshrl.u32 %v803, 5
    %v805 = vand.u32 %v803, 31
    %v806 = vsub.s32 32, %v805
    %v807 = vshrl.u32 683565275, %v806
    %v808 = vshll.u32 683565275, %v805
    %v809 = vshrl.u32 2475754826, %v806
    %v810 = vor.u32 %v808, %v809
    %v811 = vshll.u32 2475754826, %v805
    %v812 = vshrl.u32 2131351028, %v806
    %v813 = vor.u32 %v811, %v812
    %v814 = vshll.u32 2131351028, %v805
    %v815 = vshrl.u32 2102212464, %v806
    %v816 = vor.u32 %v814, %v815
    %v817 = vshll.u32 2102212464, %v805
    %v818 = vshrl.u32 920167782, %v806
    %v819 = vor.u32 %v817, %v818
    %v820 = vshll.u32 920167782, %v805
    %v821 = vshrl.u32 1326507024, %v806
    %v822 = vor.u32 %v820, %v821
    %vm823 = vcmp.lt.s32.totalorder %v804, 1
    %vm824 = vcmp.lt.s32.totalorder %v804, 2
    %vm825 = vcmp.lt.s32.totalorder %v804, 3
    %vm826 = vcmp.lt.s32.totalorder %v804, 4
    %v827 = vsel %vm823, %v807, %v810
    %v828 = vsel %vm826, %v816, 2102212464
    %v829 = vsel %vm825, %v813, %v828
    %v830 = vsel %vm824, %v827, %v829
    %v831 = vsel %vm823, %v810, %v813
    %v832 = vsel %vm826, %v819, 920167782
    %v833 = vsel %vm825, %v816, %v832
    %v834 = vsel %vm824, %v831, %v833
    %v835 = vsel %vm823, %v813, %v816
    %v836 = vsel %vm826, %v822, 1326507024
    %v837 = vsel %vm825, %v819, %v836
    %v838 = vsel %vm824, %v835, %v837
    %v839 = vshll.u32 %v799, 8
    %v840 = vmul.u32.u64.compose %v839, %v838
    %v841 = vextract.low.u32 %v840
    %v842 = vextract.high.u32 %v840
    %v843 = vmul.u32.u64.compose %v839, %v834
    %v844 = vextract.low.u32 %v843
    %v845 = vextract.high.u32 %v843
    %v846 = vmul.u32 %v839, %v830
    %v847 = vadd.s32 %v842, %v844
    %vm848 = vc.u32 %v842, %v844
    %v849 = vadd.s32 %v845, 1
    %v850 = vsel %vm848, %v849, %v845
    %v851 = vadd.s32 %v846, %v850
    %v852 = vadd.s32 %v851, 536870912
    %v853 = vshrl.u32 %v852, 30
    %v854 = vshll.u32 %v853, 30
    %v855 = vsub.s32 %v851, %v854
    %vm856 = vcmp.lt.s32.totalorder %v855, 0
    %v857 = vsub.s32 0, %v855
    %v858 = vsel %vm856, %v857, %v855
    %v859 = vclz %v858
    %v860 = vsub.s32 %v859, 2
    %vm861 = vcmp.gt.s32.totalorder 0, %v860
    %v862 = vsel %vm861, 0, %v860
    %v863 = vsub.s32 32, %v862
    %v864 = vshll.u32 %v855, %v862
    %v865 = vshrl.u32 %v847, %v863
    %v866 = vor.u32 %v864, %v865
    %v867 = vsub.s32 4294967266, %v862
    %v868 = vadd.s32 %v867, 127
    %v869 = vshll.u32 %v868, 23
    %v870 = vor.u32 4788187, %v869
    %v871 = vand.u32 2147483647, %v870
    %v873 = vcvt.s32.f32 %v866
    %v874 = vmul.f32 %v873, %v871
    %v875 = vxor.u32 %v874, 2147483648
    %v876 = vsel %vm793, %v875, %v874
    %v877 = vsub.s32 4, %v853
    %v878 = vsel %vm793, %v877, %v853
    %v879 = vsel %vm792, %v62, %v876
    %v880 = vsel %vm792, 0, %v878
    %v881 = vcosq.f32.pop %v879
    %v882 = vsinq.f32.pop %v879
    %vm883 = vweird.f32 %v62
    %v884 = vadd.s32 %v880, 3
    %v885 = vand.u32 %v884, 3
    %vm886 = vcmp.lt.s32.totalorder %v885, 2
    %vm887 = vcmp.eq.s32.totalorder %v885, 0
    %v888 = vxor.u32 %v882, 2147483648
    %v889 = vsel %vm887, %v881, %v888
    %vm890 = vcmp.eq.s32.totalorder %v885, 2
    %v891 = vxor.u32 %v881, 2147483648
    %v892 = vsel %vm890, %v891, %v882
    %v893 = vsel %vm886, %v889, %v892
    %v894 = vsel %vm883, nan, %v893
    %895 = vst [vmem:[#allocation7] sm:$0xff] %v166
    %896 = vst [vmem:[#allocation7 + $0x8] sm:$0xff] %v270
    %897 = vst [vmem:[#allocation7 + $0x10] sm:$0xff] %v374
    %898 = vst [vmem:[#allocation7 + $0x18] sm:$0xff] %v478
    %899 = vst [vmem:[#allocation7 + $0x20] sm:$0xff] %v582
    %900 = vst [vmem:[#allocation7 + $0x28] sm:$0xff] %v686
    %901 = vst [vmem:[#allocation7 + $0x30] sm:$0xff] %v790
    %902 = vst [vmem:[#allocation7 + $0x38] sm:$0xff] %v894
    // Predicated region
    $region18: #{tpu_custom_call.1} parent=1 // pred_check
      _
    $region19: #{tpu_custom_call.1} parent=1 // pred_check_branch
      %904 = sbr.rel (0) target = $region21
    $region20: #{tpu_custom_call.1} parent=1 // pred_region
      %s906 = ssub.s32 1024, 1024
      %907 = vsyncadd [#allocation4], %s906
      %s909 = sshll.u32 [#allocation7], 4
      %s910 = int_to_ptr.vmem [resolvable:$true] %s909
      %912 = dma.vmem_to_hbm [thread:$0]  %s910, 1024, %s2, [#allocation4]
    $region21: #{tpu_custom_call.1} parent=1 // pred_fallthru
      _
    // Predicated region
    $region22: #{tpu_custom_call.1} parent=1 // pred_check
      _
    $region23: #{tpu_custom_call.1} parent=1 // pred_check_branch
      %914 = sbr.rel (0) target = $region25
    $region24: #{tpu_custom_call.1} parent=1 // pred_region
      %915 = dma.done [#allocation4], 1024
    $region25: #{tpu_custom_call.1} parent=1 // pred_fallthru
      _
    %916 = vsyncpa [#allocation3], 1
    %917 = vsyncpa [#allocation4], 1
    %918 = vsyncpa [#allocation5], 1

</llo_original>
